<compile_context>
chip_gen: v7x
topology: tpu7x:2x2x1
jax: 0.10.0
libtpu: 0.0.40
codegen_flags: <defaults>
</compile_context>

<pallas_src>
import functools

import jax
import jax.numpy as jnp
from jax import lax
from jax.experimental import pallas as pl
from jax.experimental.pallas import tpu as pltpu


def _round_up(x, mult):
    return (x + mult - 1) // mult * mult


def _conv_lowrank_matmul_kernel(kmix_ref, patch_ref, bias_ref, out_ref, acc_ref):
    """One grid step == one (batch, m-tile, spatial-tile, contraction-tile).

    kmix_ref:  (tm, tk)   mixed per-output-channel kernel slab for this batch
    patch_ref: (tk, ts)   im2col patches (contraction x flattened spatial)
    bias_ref:  (1, ts)    bias pre-broadcast along flattened spatial
                          (reproduces PyTorch's width-axis broadcast of `y += bias`)
    out_ref:   (tm, ts)   lane-dense output tile (f32)
    acc_ref:   (tm, ts)   f32 accumulator, resident across the contraction axis
    """
    kk = pl.program_id(3)

    @pl.when(kk == 0)
    def _():
        acc_ref[...] = jnp.zeros_like(acc_ref)

    acc_ref[...] += jnp.dot(kmix_ref[...], patch_ref[...],
                            preferred_element_type=jnp.float32)

    @pl.when(kk == pl.num_programs(3) - 1)
    def _():
        out_ref[...] = (acc_ref[...] + bias_ref[...]).astype(out_ref.dtype)


def conv_lowrank_forward(v, u, w, bias, *, stride, padding,
                         compute_dtype=jnp.bfloat16):
    b, c, h, wd = v.shape
    m, n, k, k2 = w.shape
    bu, p, cu = u.shape
    assert k == k2 and bu == b
    assert p == n and cu == n and c == n, "module implies p == c == n_channels"

    oh = (h + 2 * padding - k) // stride + 1
    ow = (wd + 2 * padding - k) // stride + 1
    ohow = oh * ow
    ck = n * k * k

    # PyTorch `y += self.bias`: bias (m,) broadcasts against the width axis.
    if m == ow:
        bias_w = bias
    elif m == 1:
        bias_w = jnp.broadcast_to(bias, (ow,))
    else:
        raise ValueError(
            f"`y += bias` requires n_kernels ({m}) == output width ({ow}) or 1, "
            "exactly as in the PyTorch forward.")

    # ---- Stage 1 (hoisted): weight mixing == F.conv2d(self.w, u_kernel).view(...) ----
    # kmix[b', m', ci, tap] = sum_c w[(b'*m+m')//b, c, tap] * u[(b'*m+m')%b, ci, c]
    o_idx = jnp.arange(b * m)
    w_sel = w.reshape(m, n, k * k)[o_idx // b]       # (b*m, n, k*k), axis 1 = contraction c
    u_sel = u[o_idx % b]                             # (b*m, n, n),   u[., ci, c]
    kmix = jnp.einsum('oic,oct->oit', u_sel, w_sel)  # (b*m, n, k*k)
    kmix = kmix.reshape(b, m, ck)

    # ---- Stage 2 prep (hoisted): im2col slab, contraction index = ci*k*k + kh*k + kw ----
    v_pad = jnp.pad(v, ((0, 0), (0, 0), (padding, padding), (padding, padding)))
    cols = []
    for kh in range(k):
        for kw in range(k):
            sl = v_pad[:, :, kh::stride, kw::stride][:, :, :oh, :ow]
            cols.append(sl.reshape(b, n, 1, ohow))
    patches = jnp.concatenate(cols, axis=2).reshape(b, ck, ohow)

    # ---- Tile sizes: all matmul dims padded to (8, 128)-friendly multiples ----
    # m (sublane axis of the output): tile at <= 256 rows.
    m_pad = _round_up(m, 8)
    if m_pad <= 256:
        tm = m_pad
    else:
        tm = 256
        m_pad = _round_up(m, tm)
    n_m = m_pad // tm

    # contraction (n*k*k): tile at <= 512 so large channel counts stay VMEM-safe.
    ck_pad = _round_up(ck, 128)
    if ck_pad <= 512:
        tk = ck_pad
    else:
        tk = 512
        ck_pad = _round_up(ck, tk)
    n_k = ck_pad // tk

    # flattened spatial (lane axis): tile at <= 1024 lanes.
    ts = min(1024, _round_up(ohow, 128))
    ohow_pad = _round_up(ohow, ts)
    n_sp = ohow_pad // ts

    kmix_p = jnp.pad(kmix, ((0, 0), (0, m_pad - m), (0, ck_pad - ck))
                     ).astype(compute_dtype)
    patches_p = jnp.pad(patches, ((0, 0), (0, ck_pad - ck), (0, ohow_pad - ohow))
                        ).astype(compute_dtype)
    bias_row = jnp.pad(jnp.tile(bias_w, oh), (0, ohow_pad - ohow)
                       ).reshape(1, ohow_pad).astype(jnp.float32)

    grid_spec = pltpu.PrefetchScalarGridSpec(
        num_scalar_prefetch=0,
        grid=(b, n_m, n_sp, n_k),
        in_specs=[
            # kmix[b'] (tm x tk) slab for this (m-tile, k-tile)
            pl.BlockSpec((None, tm, tk), lambda i, mi, j, kk: (i, mi, kk)),
            # patches[b'] (tk x ts) slab for this (k-tile, spatial-tile)
            pl.BlockSpec((None, tk, ts), lambda i, mi, j, kk: (i, kk, j)),
            # bias row, broadcast along flattened spatial
            pl.BlockSpec((1, ts), lambda i, mi, j, kk: (0, j)),
        ],
        out_specs=pl.BlockSpec((None, tm, ts), lambda i, mi, j, kk: (i, mi, j)),
        scratch_shapes=[pltpu.VMEM((tm, ts), jnp.float32)],
    )

    out_flat = pl.pallas_call(
        _conv_lowrank_matmul_kernel,
        out_shape=jax.ShapeDtypeStruct((b, m_pad, ohow_pad), jnp.float32),
        grid_spec=grid_spec,
        compiler_params=pltpu.CompilerParams(
            dimension_semantics=("parallel", "parallel", "parallel", "arbitrary")),
    )(kmix_p, patches_p, bias_row)

    return out_flat[:, :m, :ohow].reshape(b, m, oh, ow)


def conv_lowrank_reference(v, u, w, bias, *, stride, padding):
    """Pure-JAX port of the PyTorch forward (for validation)."""
    b, c, h, wd = v.shape
    m, n, k, _ = w.shape
    j = jnp.arange(b * m)
    w_sel = w[j // b]                       # (b*m, n, k, k)
    u_sel = u[j % b]                        # (b*m, n, n)
    w_u = jnp.einsum('jckl,jnc->jnkl', w_sel, u_sel)   # mixed kernels
    x = v.reshape(1, b * c, h, wd)
    y = lax.conv_general_dilated(
        x, w_u, window_strides=(stride, stride),
        padding=[(padding, padding)] * 2,
        feature_group_count=b,
        dimension_numbers=('NCHW', 'OIHW', 'NCHW'))
    y = y.reshape(b, m, y.shape[2], y.shape[3])
    return y + bias                         # same last-axis broadcast as PyTorch


if __name__ == "__main__":
    def make_inputs(key, b, n_channels, n_kernels, sz_kernel, h, w_spatial):
        k_w, k_u, k_v = jax.random.split(key, 3)
        # kaiming_normal_(mode='fan_out', nonlinearity='relu'): std = sqrt(2 / (m*k*k))
        fan_out = n_kernels * sz_kernel * sz_kernel
        std = (2.0 / fan_out) ** 0.5
        wt = std * jax.random.normal(
            k_w, (n_kernels, n_channels, sz_kernel, sz_kernel), jnp.float32)
        bias = jnp.zeros((n_kernels,), jnp.float32)  # nn.init.constant(self.bias, 0)
        v = jax.random.normal(k_v, (b, n_channels, h, w_spatial), jnp.float32)
        u = jax.random.normal(k_u, (b, n_channels, n_channels), jnp.float32)
        return v, u, wt, bias

    # Config 1: stride 1 (n_kernels == output width so the bias broadcast is valid).
    b, n_channels, h, w_spatial = 2, 4, 8, 8
    n_kernels, sz_kernel, stride, padding = 8, 3, 1, 1
    v, u, wt, bias = make_inputs(jax.random.PRNGKey(0), b, n_channels, n_kernels,
                                 sz_kernel, h, w_spatial)
    ref = conv_lowrank_reference(v, u, wt, bias, stride=stride, padding=padding)

    fwd_f32 = jax.jit(functools.partial(conv_lowrank_forward, stride=stride,
                                        padding=padding, compute_dtype=jnp.float32))
    out_f32 = jax.block_until_ready(fwd_f32(v, u, wt, bias))
    assert out_f32.shape == ref.shape, (out_f32.shape, ref.shape)
    assert jnp.allclose(out_f32, ref, atol=1e-3, rtol=1e-3), \
        float(jnp.abs(out_f32 - ref).max())

    # Default bf16-operand / f32-accumulate path (looser tolerance for bf16 rounding).
    fwd_bf16 = jax.jit(functools.partial(conv_lowrank_forward, stride=stride,
                                         padding=padding, compute_dtype=jnp.bfloat16))
    out_bf16 = jax.block_until_ready(fwd_bf16(v, u, wt, bias))
    assert jnp.allclose(out_bf16, ref, atol=1e-1, rtol=2e-2), \
        float(jnp.abs(out_bf16 - ref).max())

    # Config 2: exercise the stride-2 path (n_kernels == output width == 4).
    b2, n2, h2, ws2 = 2, 4, 8, 8
    m2, sk2, s2, p2 = 4, 3, 2, 1
    v2, u2, wt2, bias2 = make_inputs(jax.random.PRNGKey(1), b2, n2, m2, sk2, h2, ws2)
    ref2 = conv_lowrank_reference(v2, u2, wt2, bias2, stride=s2, padding=p2)
    out2 = jax.block_until_ready(jax.jit(functools.partial(
        conv_lowrank_forward, stride=s2, padding=p2,
        compute_dtype=jnp.float32))(v2, u2, wt2, bias2))
    assert out2.shape == ref2.shape, (out2.shape, ref2.shape)
    assert jnp.allclose(out2, ref2, atol=1e-3, rtol=1e-3), \
        float(jnp.abs(out2 - ref2).max())

    print("KERNEL_OK")
</pallas_src>

<mosaic_0001>
module attributes {stable_mosaic.version = 11 : i64} {
  func.func @_conv_lowrank_matmul_kernel(%arg0: i32, %arg1: i32, %arg2: i32, %arg3: i32, %arg4: memref<1x8x128xf32, #tpu.memory_space<vmem>>, %arg5: memref<1x128x128xf32, #tpu.memory_space<vmem>>, %arg6: memref<1x128xf32, #tpu.memory_space<vmem>>, %arg7: memref<1x8x128xf32, #tpu.memory_space<vmem>>, %arg8: memref<8x128xf32, #tpu.memory_space<vmem>>) attributes {dimension_semantics = [#tpu.dimension_semantics<parallel>, #tpu.dimension_semantics<parallel>, #tpu.dimension_semantics<parallel>, #tpu.dimension_semantics<arbitrary>], iteration_bounds = array<i64: 2, 1, 1, 1>, scalar_prefetch = 0 : i64, scratch_operands = 1 : i64, tpu.core_type = #tpu.core_type<tc>, window_params = [{transform_indices = @transform_0, window_bounds = array<i64: 1, 8, 128>}, {transform_indices = @transform_1, window_bounds = array<i64: 1, 128, 128>}, {transform_indices = @transform_2, window_bounds = array<i64: 1, 128>}, {transform_indices = @transform_3, window_bounds = array<i64: 1, 8, 128>}]} {
    %c0_i32 = arith.constant 0 : i32
    %0 = arith.cmpi eq, %arg3, %c0_i32 : i32
    %1 = arith.extui %0 : i1 to i32
    %c0_i32_0 = arith.constant 0 : i32
    %2 = arith.cmpi ne, %1, %c0_i32_0 : i32
    scf.if %2 {
      %cst_12 = arith.constant 0.000000e+00 : f32
      %14 = vector.broadcast %cst_12 : f32 to vector<8x128xf32>
      %c0_13 = arith.constant 0 : index
      %c0_14 = arith.constant 0 : index
      %15 = vector.load %arg8[%c0_13, %c0_14] : memref<8x128xf32, #tpu.memory_space<vmem>>, vector<8x128xf32>
      tpu.vector_store %arg8[%c0_13, %c0_14], %14 {strides = array<i32>} : memref<8x128xf32, #tpu.memory_space<vmem>>, vector<8x128xf32>,
    } else {
    }
    %c0 = arith.constant 0 : index
    %c0_1 = arith.constant 0 : index
    %3 = vector.load %arg8[%c0, %c0_1] : memref<8x128xf32, #tpu.memory_space<vmem>>, vector<8x128xf32>
    %c0_2 = arith.constant 0 : index
    %c0_3 = arith.constant 0 : index
    %c0_4 = arith.constant 0 : index
    %4 = vector.load %arg4[%c0_2, %c0_3, %c0_4] : memref<1x8x128xf32, #tpu.memory_space<vmem>>, vector<1x8x128xf32>
    %5 = vector.shape_cast %4 : vector<1x8x128xf32> to vector<8x128xf32>
    %c0_5 = arith.constant 0 : index
    %c0_6 = arith.constant 0 : index
    %c0_7 = arith.constant 0 : index
    %6 = vector.load %arg5[%c0_5, %c0_6, %c0_7] : memref<1x128x128xf32, #tpu.memory_space<vmem>>, vector<1x128x128xf32>
    %7 = vector.shape_cast %6 : vector<1x128x128xf32> to vector<128x128xf32>
    %cst = arith.constant dense<0.000000e+00> : vector<8x128xf32>
    %8 = tpu.matmul %5, %7, %cst {dimension_numbers = #tpu.dot_dimension_numbers<[1], [0], [0], [1], [0, 0, 1, 1], [], []>} : vector<8x128xf32>, vector<128x128xf32>, vector<8x128xf32> -> vector<8x128xf32>
    %9 = arith.addf %3, %8 : vector<8x128xf32>
    %c0_8 = arith.constant 0 : index
    %c0_9 = arith.constant 0 : index
    %10 = vector.load %arg8[%c0_8, %c0_9] : memref<8x128xf32, #tpu.memory_space<vmem>>, vector<8x128xf32>
    tpu.vector_store %arg8[%c0_8, %c0_9], %9 {strides = array<i32>} : memref<8x128xf32, #tpu.memory_space<vmem>>, vector<8x128xf32>,
    %c0_i32_10 = arith.constant 0 : i32
    %11 = arith.cmpi eq, %arg3, %c0_i32_10 : i32
    %12 = arith.extui %11 : i1 to i32
    %c0_i32_11 = arith.constant 0 : i32
    %13 = arith.cmpi ne, %12, %c0_i32_11 : i32
    scf.if %13 {
      %c0_12 = arith.constant 0 : index
      %c0_13 = arith.constant 0 : index
      %14 = vector.load %arg8[%c0_12, %c0_13] : memref<8x128xf32, #tpu.memory_space<vmem>>, vector<8x128xf32>
      %c0_14 = arith.constant 0 : index
      %c0_15 = arith.constant 0 : index
      %15 = vector.load %arg6[%c0_14, %c0_15] : memref<1x128xf32, #tpu.memory_space<vmem>>, vector<1x128xf32>
      %16 = vector.broadcast %15 : vector<1x128xf32> to vector<8x128xf32>
      %17 = arith.addf %14, %16 : vector<8x128xf32>
      %c0_16 = arith.constant 0 : index
      %c0_17 = arith.constant 0 : index
      %c0_18 = arith.constant 0 : index
      %18 = vector.load %arg7[%c0_16, %c0_17, %c0_18] : memref<1x8x128xf32, #tpu.memory_space<vmem>>, vector<1x8x128xf32>
      %19 = vector.shape_cast %18 : vector<1x8x128xf32> to vector<8x128xf32>
      %20 = vector.shape_cast %17 : vector<8x128xf32> to vector<1x8x128xf32>
      tpu.vector_store %arg7[%c0_16, %c0_17, %c0_18], %20 {strides = array<i32>} : memref<1x8x128xf32, #tpu.memory_space<vmem>>, vector<1x8x128xf32>,
    } else {
    }
    return
  }
  func.func @transform_0(%arg0: i32, %arg1: i32, %arg2: i32, %arg3: i32) -> (i32, i32, i32) {
    %c0_i32 = arith.constant 0 : i32
    return %arg0, %arg1, %arg3 : i32, i32, i32
  }
  func.func @transform_1(%arg0: i32, %arg1: i32, %arg2: i32, %arg3: i32) -> (i32, i32, i32) {
    %c0_i32 = arith.constant 0 : i32
    return %arg0, %arg3, %arg2 : i32, i32, i32
  }
  func.func @transform_2(%arg0: i32, %arg1: i32, %arg2: i32, %arg3: i32) -> (i32, i32) {
    %c0_i32 = arith.constant 0 : i32
    %c0_i32_0 = arith.constant 0 : i32
    return %c0_i32, %arg2 : i32, i32
  }
  func.func @transform_3(%arg0: i32, %arg1: i32, %arg2: i32, %arg3: i32) -> (i32, i32, i32) {
    %c0_i32 = arith.constant 0 : i32
    return %arg0, %arg1, %arg2 : i32, i32, i32
  }
}

</mosaic_0001>

<llo_original>
// kernel: tile.8
$region0: #{tile.8}
  #allocation0 [shape = 's32[1]{0}', space=sflag, size = 0x4, scoped, tag = 'scoped memory for tile.8']
  %s0 = inlined_call_operand.vmem [shape: f32[8], index: 0, kind: input, shape index: {}]
  %s1 = inlined_call_operand.vmem [shape: f32[8,8], index: 1, kind: output, shape index: {}]
  // Predicated region
  $region2: #{tile.8} parent=0 // pred_check
    _
  $region3: #{tile.8} parent=0 // pred_check_branch
    %3 = sbr.rel (0) target = $region5
  $region4: #{tile.8} parent=0 // pred_region
    _
  $region5: #{tile.8} parent=0 // pred_fallthru
    _
  %v4 = vld [vmem:[%s0] ss:$0 sm:$0xff]
  %5 = vst [vmem:[%s1] sm:$0xff] %v4

// kernel: tile.9
$region0: #{tile.9}
  %s0 = inlined_call_operand.vmem [shape: f32[8,8], index: 0, kind: input, shape index: {}]
  %s1 = inlined_call_operand.vmem [shape: f32[64], index: 1, kind: output, shape index: {}]
  $region1: #{tile.9} parent=0
    #allocation0 [shape = 'u8[4096]{0}', space=vmem, size = 0x1000, scoped, tag = 'scoped mem for output reshape']
    %v2 = vld [vmem:[%s0] sm:$0x1]
    %vm3 = vcmask 64512
    %4 = vst.msk [vmem:[#allocation0] sm:$0x1] %vm3, %v2
    %s5 = scalar_lea.vmem %s0, 7
    %v6 = vld [vmem:[%s5] sm:$0x1]
    %7 = vrot.lane.b32.xlu0 %v6, 56
    %v8 = vpop.permute.xlu0 %7
    %vm9 = vcmask 523712
    %10 = vst.msk [vmem:[#allocation0] sm:$0x1] %vm9, %v8
    %s11 = scalar_lea.vmem %s0, 6
    %v12 = vld [vmem:[%s11] sm:$0x1]
    %13 = vrot.lane.b32.xlu0 %v12, 48
    %v14 = vpop.permute.xlu0 %13
    %vm15 = vcmask 458112
    %16 = vst.msk [vmem:[#allocation0] sm:$0x1] %vm15, %v14
    %s17 = scalar_lea.vmem %s0, 5
    %v18 = vld [vmem:[%s17] sm:$0x1]
    %19 = vrot.lane.b32.xlu0 %v18, 40
    %v20 = vpop.permute.xlu0 %19
    %vm21 = vcmask 392512
    %22 = vst.msk [vmem:[#allocation0] sm:$0x1] %vm21, %v20
    %s23 = scalar_lea.vmem %s0, 4
    %v24 = vld [vmem:[%s23] sm:$0x1]
    %25 = vrot.lane.b32.xlu0 %v24, 32
    %v26 = vpop.permute.xlu0 %25
    %vm27 = vcmask 326912
    %28 = vst.msk [vmem:[#allocation0] sm:$0x1] %vm27, %v26
    %s29 = scalar_lea.vmem %s0, 3
    %v30 = vld [vmem:[%s29] sm:$0x1]
    %31 = vrot.lane.b32.xlu0 %v30, 24
    %v32 = vpop.permute.xlu0 %31
    %vm33 = vcmask 261312
    %34 = vst.msk [vmem:[#allocation0] sm:$0x1] %vm33, %v32
    %s35 = scalar_lea.vmem %s0, 2
    %v36 = vld [vmem:[%s35] sm:$0x1]
    %37 = vrot.lane.b32.xlu0 %v36, 16
    %v38 = vpop.permute.xlu0 %37
    %vm39 = vcmask 195712
    %40 = vst.msk [vmem:[#allocation0] sm:$0x1] %vm39, %v38
    %s41 = scalar_lea.vmem %s0, 1
    %v42 = vld [vmem:[%s41] sm:$0x1]
    %43 = vrot.lane.b32.xlu0 %v42, 8
    %v44 = vpop.permute.xlu0 %43
    %vm45 = vcmask 130112
    %46 = vst.msk [vmem:[#allocation0] sm:$0x1] %vm45, %v44
    %s48 = sshllo.u32 0, 1
    %v50 = vld [vmem:[#allocation0] sm:%s48]
    %s51 = sshllo.u32 0, 1
    %52 = vst [vmem:[%s1] sm:%s51] %v50

// kernel: conv_lowrank_forward.1
$region0: #{conv_lowrank_forward.1}
  #allocation0 [shape = 'u32[]', space=smem, size = 0x4, offset = 0x4, fixed_abs, tag = 'smem constant byte address 0x4 - core index']
  #allocation1 [shape = 'u32[144,128]{1,0:T(1,128)}', space=vmem, size = 0x12000, scoped, tag = 'internal scratch']
  #allocation2 [shape = 'f32[8,128]{1,0:T(8,128)}', space=vmem, size = 0x1000, scoped, tag = 'scratch operand']
  %s0 = inlined_call_operand.vmem [shape: f32[2,8,128], index: 0, kind: input, shape index: {}]
  %s1 = inlined_call_operand.vmem [shape: f32[2,128,128], index: 1, kind: input, shape index: {}]
  %s2 = inlined_call_operand.vmem [shape: f32[1,128], index: 2, kind: input, shape index: {}]
  %s3 = inlined_call_operand.vmem [shape: f32[2,8,128], index: 3, kind: output, shape index: {}]
  %s4 = sld [smem:[#allocation0]]
  $region53: #{conv_lowrank_forward.1} parent=0
    _
  %s6 = ssub.s32 1, %s4
  %s7 = scalar_select 0, %s6, %s4
  loop: start=0, step=1, limit=4
  $region2: #{conv_lowrank_forward.1} parent=0 // loop_pre_header
    _
  $region3: #{conv_lowrank_forward.1} parent=0 // loop_header
    %s9 = sphi 0, %s13
    %p10 = scmp.ge.s32.totalorder %s9, 4
    %s16 = sphi 0, %s42
    %s17 = sphi 0, %s38
    %s18 = sphi 0, %s34
    %s19 = sphi 0, %s30
    %s20 = sphi 0, %s16
    %s21 = sphi 0, %s17
    %s22 = sphi 0, %s18
    %s23 = sphi 0, %s19
    %s24 = sphi 0, %s20
    %s25 = sphi 0, %s21
    %s26 = sphi 0, %s22
    %s27 = sphi 0, %s23
    %s49 = sphi 0, %s51
    %s52 = sphi 0, %s49
    %s53 = sphi 0, %s52
    %s69 = sphi 0, %s53
    %s79 = sphi 0, %s81
    %s82 = sphi 0, %s79
    %s83 = sphi 0, %s82
    %s99 = sphi 0, %s83
    %s105 = sphi 0, %s107
    %s108 = sphi 0, %s105
    %s109 = sphi 0, %s108
    %s125 = sphi 0, %s109
    %s135 = sphi 0, %s137
    %s138 = sphi 0, %s135
    %s139 = sphi 0, %s138
    %s155 = sphi 0, %s139
  $region4: #{conv_lowrank_forward.1} parent=0 // loop_header_branch
    %12 = sbr.rel (%p10) target = $region8
  $region5: #{conv_lowrank_forward.1} parent=0 // loop_body
    %s14 = ssub.s32 %s9, 1
    %s15 = ssub.s32 %s9, 2
    %s28 = sadd.s32 1, %s19
    %p29 = scmp.ge.s32.totalorder %s28, 1
    %s30 = scalar_select %p29, 0, %s28
    %s31 = sadd.s32 1, %s18
    %s32 = scalar_select %p29, %s31, %s18
    %p33 = scmp.ge.s32.totalorder %s32, 1
    %s34 = scalar_select %p33, 0, %s32
    %s35 = sadd.s32 1, %s17
    %s36 = scalar_select %p33, %s35, %s17
    %p37 = scmp.ge.s32.totalorder %s36, 1
    %s38 = scalar_select %p37, 0, %s36
    %s39 = sadd.s32 1, %s16
    %s40 = scalar_select %p37, %s39, %s16
    %p41 = scmp.ge.s32.totalorder %s40, 2
    %s42 = scalar_select %p41, 0, %s40
    %s43 = ssub.s32 %s16, %s42
    %s44 = ssub.s32 %s17, %s38
    %s45 = sor.u32 %s43, %s44
    %s46 = ssub.s32 %s19, %s30
    %s47 = sor.u32 %s45, %s46
    %p48 = scmp.eq.s32.totalorder %s47, 0
    %s50 = sadd.s32 %s49, 1
    %s51 = scalar_select %p48, %s49, %s50
    %p54 = pneg %p48
    %p55 = scmp.eq.s32.totalorder %s9, 1
    %p56 = por %p54, %p55
    %p57 = scmp.ne.s32.totalorder %s49, %s52
    %p58 = scmp.eq.s32.totalorder %s9, 0
    %p59 = por %p57, %p58
    %p60 = scmp.ne.s32.totalorder %s49, %s52
    %p61 = scmp.eq.s32.totalorder %s14, 1
    %p62 = por %p60, %p61
    %p63 = scmp.ne.s32.totalorder %s52, %s53
    %p64 = scmp.eq.s32.totalorder %s14, 0
    %p65 = por %p63, %p64
    %p66 = scmp.ne.s32.totalorder %s52, %s53
    %p67 = scmp.eq.s32.totalorder %s15, 1
    %p68 = por %p66, %p67
    %p70 = scmp.ne.s32.totalorder %s53, %s69
    %p71 = scmp.eq.s32.totalorder %s15, 0
    %p72 = por %p70, %p71
    %s73 = ssub.s32 %s16, %s42
    %s74 = ssub.s32 %s19, %s30
    %s75 = sor.u32 %s73, %s74
    %s76 = ssub.s32 %s18, %s34
    %s77 = sor.u32 %s75, %s76
    %p78 = scmp.eq.s32.totalorder %s77, 0
    %s80 = sadd.s32 %s79, 1
    %s81 = scalar_select %p78, %s79, %s80
    %p84 = pneg %p78
    %p85 = scmp.eq.s32.totalorder %s9, 1
    %p86 = por %p84, %p85
    %p87 = scmp.ne.s32.totalorder %s79, %s82
    %p88 = scmp.eq.s32.totalorder %s9, 0
    %p89 = por %p87, %p88
    %p90 = scmp.ne.s32.totalorder %s79, %s82
    %p91 = scmp.eq.s32.totalorder %s14, 1
    %p92 = por %p90, %p91
    %p93 = scmp.ne.s32.totalorder %s82, %s83
    %p94 = scmp.eq.s32.totalorder %s14, 0
    %p95 = por %p93, %p94
    %p96 = scmp.ne.s32.totalorder %s82, %s83
    %p97 = scmp.eq.s32.totalorder %s15, 1
    %p98 = por %p96, %p97
    %p100 = scmp.ne.s32.totalorder %s83, %s99
    %p101 = scmp.eq.s32.totalorder %s15, 0
    %p102 = por %p100, %p101
    %s103 = ssub.s32 %s18, %s34
    %p104 = scmp.eq.s32.totalorder %s103, 0
    %s106 = sadd.s32 %s105, 1
    %s107 = scalar_select %p104, %s105, %s106
    %p110 = pneg %p104
    %p111 = scmp.eq.s32.totalorder %s9, 1
    %p112 = por %p110, %p111
    %p113 = scmp.ne.s32.totalorder %s105, %s108
    %p114 = scmp.eq.s32.totalorder %s9, 0
    %p115 = por %p113, %p114
    %p116 = scmp.ne.s32.totalorder %s105, %s108
    %p117 = scmp.eq.s32.totalorder %s14, 1
    %p118 = por %p116, %p117
    %p119 = scmp.ne.s32.totalorder %s108, %s109
    %p120 = scmp.eq.s32.totalorder %s14, 0
    %p121 = por %p119, %p120
    %p122 = scmp.ne.s32.totalorder %s108, %s109
    %p123 = scmp.eq.s32.totalorder %s15, 1
    %p124 = por %p122, %p123
    %p126 = scmp.ne.s32.totalorder %s109, %s125
    %p127 = scmp.eq.s32.totalorder %s15, 0
    %p128 = por %p126, %p127
    %s129 = ssub.s32 %s16, %s42
    %s130 = ssub.s32 %s17, %s38
    %s131 = sor.u32 %s129, %s130
    %s132 = ssub.s32 %s18, %s34
    %s133 = sor.u32 %s131, %s132
    %p134 = scmp.eq.s32.totalorder %s133, 0
    %s136 = sadd.s32 %s135, 1
    %s137 = scalar_select %p134, %s135, %s136
    %p140 = pneg %p134
    %p141 = scmp.eq.s32.totalorder %s9, 1
    %p142 = por %p140, %p141
    %p143 = scmp.ne.s32.totalorder %s135, %s138
    %p144 = scmp.eq.s32.totalorder %s9, 0
    %p145 = por %p143, %p144
    %p146 = scmp.ne.s32.totalorder %s135, %s138
    %p147 = scmp.eq.s32.totalorder %s14, 1
    %p148 = por %p146, %p147
    %p149 = scmp.ne.s32.totalorder %s138, %s139
    %p150 = scmp.eq.s32.totalorder %s14, 0
    %p151 = por %p149, %p150
    %p152 = scmp.ne.s32.totalorder %s138, %s139
    %p153 = scmp.eq.s32.totalorder %s15, 1
    %p154 = por %p152, %p153
    %p156 = scmp.ne.s32.totalorder %s139, %s155
    %p157 = scmp.eq.s32.totalorder %s15, 0
    %p158 = por %p156, %p157
    %p159 = scmp.le.s32.totalorder 1, %s9
    %p160 = scmp.lt.s32.totalorder %s9, 3
    %p161 = pnand %p159, %p160
    %p162 = pneg %p161
    // Predicated region
    $region9: #{conv_lowrank_forward.1} parent=5 // pred_check
      _
    $region10: #{conv_lowrank_forward.1} parent=5 // pred_check_branch
      %164 = sbr.rel (%p161) target = $region12
    $region11: #{conv_lowrank_forward.1} parent=5 // pred_region
      %s165 = ssub.s32 %s9, 1
      // Predicated region
      $region13: #{conv_lowrank_forward.1} parent=11 // pred_check
        %p166 = pneg %p121
      $region14: #{conv_lowrank_forward.1} parent=11 // pred_check_branch
        %168 = sbr.rel (%p166) target = $region16
      $region15: #{conv_lowrank_forward.1} parent=11 // pred_region
        %p169 = scmp.lt.s32.totalorder %s22, 0
        %s170 = scalar_select %p169, %s22, 0
        %s171 = scalar_lea.vmem %s2, %s170
      $region16: #{conv_lowrank_forward.1} parent=11 // pred_fallthru
        _
    $region12: #{conv_lowrank_forward.1} parent=5 // pred_fallthru
      _
    %p172 = scmp.lt.s32.totalorder %s9, 2
    // Predicated region
    $region17: #{conv_lowrank_forward.1} parent=5 // pred_check
      %p173 = pneg %p172
    $region18: #{conv_lowrank_forward.1} parent=5 // pred_check_branch
      %175 = sbr.rel (%p173) target = $region20
    $region19: #{conv_lowrank_forward.1} parent=5 // pred_region
      // Predicated region
      $region21: #{conv_lowrank_forward.1} parent=19 // pred_check
        %p176 = pneg %p59
      $region22: #{conv_lowrank_forward.1} parent=19 // pred_check_branch
        %178 = sbr.rel (%p176) target = $region24
      $region23: #{conv_lowrank_forward.1} parent=19 // pred_region
        %p179 = scmp.lt.s32.totalorder %s16, 1
        %s180 = scalar_select %p179, %s16, 1
        %p181 = scmp.lt.s32.totalorder %s17, 0
        %s182 = scalar_select %p181, %s17, 0
        %p183 = scmp.lt.s32.totalorder %s19, 0
        %s184 = scalar_select %p183, %s19, 0
        %s185 = sadd.s32 %s184, %s182
        %s186 = sadd.s32 %s185, %s180
        %s187 = smul.addr %s186, 8
        %s188 = scalar_lea.vmem %s0, %s187
      $region24: #{conv_lowrank_forward.1} parent=19 // pred_fallthru
        _
      // Predicated region
      $region25: #{conv_lowrank_forward.1} parent=19 // pred_check
        %p189 = pneg %p89
      $region26: #{conv_lowrank_forward.1} parent=19 // pred_check_branch
        %191 = sbr.rel (%p189) target = $region28
      $region27: #{conv_lowrank_forward.1} parent=19 // pred_region
        %s192 = smul.u32 16, %s19
        %p193 = scmp.lt.s32.totalorder %s16, 1
        %s194 = scalar_select %p193, %s16, 1
        %p195 = scmp.lt.s32.totalorder %s192, 15
        %s196 = scalar_select %p195, %s192, 15
        %p197 = scmp.lt.s32.totalorder %s18, 0
        %s198 = scalar_select %p197, %s18, 0
        %s199 = sadd.s32 %s198, %s196
        %s200 = smul.addr %s194, 16
        %s201 = sadd.s32 %s199, %s200
        %s202 = smul.addr %s201, 8
        %s203 = scalar_lea.vmem %s1, %s202
        %s204 = smul.u32 16, %s19
      $region28: #{conv_lowrank_forward.1} parent=19 // pred_fallthru
        _
    $region20: #{conv_lowrank_forward.1} parent=5 // pred_fallthru
      _
    %p205 = scmp.le.s32.totalorder 1, %s9
    %p206 = scmp.lt.s32.totalorder %s9, 3
    %p207 = pnand %p205, %p206
    %p208 = pneg %p207
    // Predicated region
    $region29: #{conv_lowrank_forward.1} parent=5 // pred_check
      _
    $region30: #{conv_lowrank_forward.1} parent=5 // pred_check_branch
      %210 = sbr.rel (%p207) target = $region32
    $region31: #{conv_lowrank_forward.1} parent=5 // pred_region
      %s211 = ssub.s32 %s9, 1
      %p212 = scmp.lt.s32.totalorder %s20, 1
      %s213 = scalar_select %p212, %s20, 1
      %p214 = scmp.lt.s32.totalorder %s21, 0
      %s215 = scalar_select %p214, %s21, 0
      %p216 = scmp.lt.s32.totalorder %s23, 0
      %s217 = scalar_select %p216, %s23, 0
      %s218 = sadd.s32 %s217, %s215
      %s219 = sadd.s32 %s218, %s213
      %s220 = smul.addr %s219, 8
      %s221 = scalar_lea.vmem %s0, %s220
      %p222 = pneg %p65
      %p223 = pneg %p62
      %s224 = smul.u32 16, %s23
      %p225 = scmp.lt.s32.totalorder %s20, 1
      %s226 = scalar_select %p225, %s20, 1
      %p227 = scmp.lt.s32.totalorder %s224, 15
      %s228 = scalar_select %p227, %s224, 15
      %p229 = scmp.lt.s32.totalorder %s22, 0
      %s230 = scalar_select %p229, %s22, 0
      %s231 = sadd.s32 %s230, %s228
      %s232 = smul.addr %s226, 16
      %s233 = sadd.s32 %s231, %s232
      %s234 = smul.addr %s233, 8
      %s235 = scalar_lea.vmem %s1, %s234
      %p236 = pneg %p95
      %p237 = pneg %p92
      %p238 = scmp.lt.s32.totalorder %s22, 0
      %s239 = scalar_select %p238, %s22, 0
      %s240 = scalar_lea.vmem %s2, %s239
      %p241 = pneg %p121
      %p242 = pneg %p118
      %p243 = pneg %p151
      %p244 = pneg %p148
      %p245 = scmp.lt.s32.totalorder %s20, 1
      %s246 = scalar_select %p245, %s20, 1
      %p247 = scmp.lt.s32.totalorder %s21, 0
      %s248 = scalar_select %p247, %s21, 0
      %p249 = scmp.lt.s32.totalorder %s22, 0
      %s250 = scalar_select %p249, %s22, 0
      %s251 = sadd.s32 %s250, %s248
      %s252 = sadd.s32 %s251, %s246
      %s253 = smul.addr %s252, 8
      %s254 = scalar_lea.vmem %s3, %s253
      %p255 = scmp.lt.s32.totalorder %s20, 1
      %s256 = scalar_select %p255, %s20, 1
      %p257 = scmp.lt.s32.totalorder %s21, 0
      %s258 = scalar_select %p257, %s21, 0
      %p259 = scmp.lt.s32.totalorder %s23, 0
      %s260 = scalar_select %p259, %s23, 0
      %s261 = sadd.s32 %s260, %s258
      %s262 = sadd.s32 %s261, %s256
      %s263 = smul.addr %s262, 8
      %s264 = scalar_lea.vmem %s0, %s263
      %s265 = smul.u32 16, %s23
      %p266 = scmp.lt.s32.totalorder %s20, 1
      %s267 = scalar_select %p266, %s20, 1
      %p268 = scmp.lt.s32.totalorder %s265, 15
      %s269 = scalar_select %p268, %s265, 15
      %p270 = scmp.lt.s32.totalorder %s22, 0
      %s271 = scalar_select %p270, %s22, 0
      %s272 = sadd.s32 %s271, %s269
      %s273 = smul.addr %s267, 16
      %s274 = sadd.s32 %s272, %s273
      %s275 = smul.addr %s274, 8
      %s276 = scalar_lea.vmem %s1, %s275
      %s277 = smul.u32 16, %s23
      %p278 = scmp.lt.s32.totalorder %s22, 0
      %s279 = scalar_select %p278, %s22, 0
      %s280 = scalar_lea.vmem %s2, %s279
      %p281 = scmp.lt.s32.totalorder %s20, 1
      %s282 = scalar_select %p281, %s20, 1
      %p283 = scmp.lt.s32.totalorder %s21, 0
      %s284 = scalar_select %p283, %s21, 0
      %p285 = scmp.lt.s32.totalorder %s22, 0
      %s286 = scalar_select %p285, %s22, 0
      %s287 = sadd.s32 %s286, %s284
      %s288 = sadd.s32 %s287, %s282
      %s289 = smul.addr %s288, 8
      %s290 = scalar_lea.vmem %s3, %s289
      %p291 = scmp.eq.s32.totalorder %s23, 0
      // Predicated region
      $region33: #{conv_lowrank_forward.1} parent=31 // pred_check
        %p292 = pneg %p291
      $region34: #{conv_lowrank_forward.1} parent=31 // pred_check_branch
        %294 = sbr.rel (%p292) target = $region36
      $region35: #{conv_lowrank_forward.1} parent=31 // pred_region
        %295 = vst [vmem:[#allocation2] sm:$0xff] 0.0
      $region36: #{conv_lowrank_forward.1} parent=31 // pred_fallthru
        _
      %v296 = vld [vmem:[#allocation2] sm:$0xff]
      %v297 = vld [vmem:[%s264] sm:$0xff]
      %v298 = vld [vmem:[%s276] sm:$0xff]
      %v299 = vld [vmem:[%s276 + $0x8] sm:$0xff]
      %v300 = vld [vmem:[%s276 + $0x10] sm:$0xff]
      %v301 = vld [vmem:[%s276 + $0x18] sm:$0xff]
      %v302 = vld [vmem:[%s276 + $0x20] sm:$0xff]
      %v303 = vld [vmem:[%s276 + $0x28] sm:$0xff]
      %v304 = vld [vmem:[%s276 + $0x30] sm:$0xff]
      %v305 = vld [vmem:[%s276 + $0x38] sm:$0xff]
      %v306 = vld [vmem:[%s276 + $0x40] sm:$0xff]
      %v307 = vld [vmem:[%s276 + $0x48] sm:$0xff]
      %v308 = vld [vmem:[%s276 + $0x50] sm:$0xff]
      %v309 = vld [vmem:[%s276 + $0x58] sm:$0xff]
      %v310 = vld [vmem:[%s276 + $0x60] sm:$0xff]
      %v311 = vld [vmem:[%s276 + $0x68] sm:$0xff]
      %v312 = vld [vmem:[%s276 + $0x70] sm:$0xff]
      %v313 = vld [vmem:[%s276 + $0x78] sm:$0xff]
      %314 = vmatprep.subr.mxu0 0.0
      %315 = vmatpush1.msra.mxu0 %v298
      %316 = vmatprep.subr.mxu0 0.0
      %317 = vmatpush1.msra.mxu0 %v299
      %318 = vmatprep.subr.mxu0 0.0
      %319 = vmatpush1.msra.mxu0 %v300
      %320 = vmatprep.subr.mxu0 0.0
      %321 = vmatpush1.msra.mxu0 %v301
      %322 = vmatprep.subr.mxu0 0.0
      %323 = vmatpush1.msra.mxu0 %v302
      %324 = vmatprep.subr.mxu0 0.0
      %325 = vmatpush1.msra.mxu0 %v303
      %326 = vmatprep.subr.mxu0 0.0
      %327 = vmatpush1.msra.mxu0 %v304
      %328 = vmatprep.subr.mxu0 0.0
      %329 = vmatpush1.msra.mxu0 %v305
      %330 = vmatprep.subr.mxu0 0.0
      %331 = vmatpush1.msra.mxu0 %v306
      %332 = vmatprep.subr.mxu0 0.0
      %333 = vmatpush1.msra.mxu0 %v307
      %334 = vmatprep.subr.mxu0 0.0
      %335 = vmatpush1.msra.mxu0 %v308
      %336 = vmatprep.subr.mxu0 0.0
      %337 = vmatpush1.msra.mxu0 %v309
      %338 = vmatprep.subr.mxu0 0.0
      %339 = vmatpush1.msra.mxu0 %v310
      %340 = vmatprep.subr.mxu0 0.0
      %341 = vmatpush1.msra.mxu0 %v311
      %342 = vmatprep.subr.mxu0 0.0
      %343 = vmatpush1.msra.mxu0 %v312
      %344 = vmatprep.subr.mxu0 0.0
      %345 = vmatpush1.msra.mxu0 %v313
      %346 = vmatprep.subr.mxu0 0.0
      %347 = vmatpush1.msra.mxu0 0.0
      %348 = vmatprep.subr.mxu0 0.0
      %349 = vmatpush1.msra.mxu0 0.0
      %350 = vmatprep.subr.mxu0 0.0
      %351 = vmatpush1.msra.mxu0 0.0
      %352 = vmatprep.subr.mxu0 0.0
      %353 = vmatpush1.msra.mxu0 0.0
      %354 = vmatprep.subr.mxu0 0.0
      %355 = vmatpush1.msra.mxu0 0.0
      %356 = vmatprep.subr.mxu0 0.0
      %357 = vmatpush1.msra.mxu0 0.0
      %358 = vmatprep.subr.mxu0 0.0
      %359 = vmatpush1.msra.mxu0 0.0
      %360 = vmatprep.subr.mxu0 0.0
      %361 = vmatpush1.msra.mxu0 0.0
      %362 = vmatprep.subr.mxu0 0.0
      %363 = vmatpush1.msra.mxu0 0.0
      %364 = vmatprep.subr.mxu0 0.0
      %365 = vmatpush1.msra.mxu0 0.0
      %366 = vmatprep.subr.mxu0 0.0
      %367 = vmatpush1.msra.mxu0 0.0
      %368 = vmatprep.subr.mxu0 0.0
      %369 = vmatpush1.msra.mxu0 0.0
      %370 = vmatprep.subr.mxu0 0.0
      %371 = vmatpush1.msra.mxu0 0.0
      %372 = vmatprep.subr.mxu0 0.0
      %373 = vmatpush1.msra.mxu0 0.0
      %374 = vmatprep.subr.mxu0 0.0
      %375 = vmatpush1.msra.mxu0 0.0
      %376 = vmatprep.subr.mxu0 0.0
      %377 = vmatpush1.msra.mxu0 0.0
      %378 = vmatprep.mubr.f32.mxu0 0.0
      %379 = vmatmul.mubr.f32.gmra.mrb[0].mxu0 %v297
      %v380 = vpop.f32.mrb[0].mxu0
      %v381 = vadd.f32 0.0, %v380
      %v382 = vpop.f32.mrb[0].mxu0
      %383 = vdwg.mxu0
      %v384 = vadd.f32 %v296, %v381
      %385 = vst [vmem:[#allocation2] sm:$0xff] %v384
      // Predicated region
      $region37: #{conv_lowrank_forward.1} parent=31 // pred_check
        %p386 = pneg %p291
      $region38: #{conv_lowrank_forward.1} parent=31 // pred_check_branch
        %388 = sbr.rel (%p386) target = $region40
      $region39: #{conv_lowrank_forward.1} parent=31 // pred_region
        %v389 = vld [vmem:[#allocation2] sm:$0xff]
        %v390 = vld [vmem:[%s280] sm:$0x1]
        %v392 = vlaneseq
        %v393 = vshrl.u32 %v392, 7
        %v394 = vsub.s32 0, %v393
        %v395 = vrot.slane %v390, %v394
        %v397 = vadd.f32 %v389, %v395
        %398 = vst [vmem:[%s290] sm:$0xff] %v397
      $region40: #{conv_lowrank_forward.1} parent=31 // pred_fallthru
        _
      %p399 = scmp.lt.s32.totalorder %s20, 1
      %s400 = scalar_select %p399, %s20, 1
      %p401 = scmp.lt.s32.totalorder %s21, 0
      %s402 = scalar_select %p401, %s21, 0
      %p403 = scmp.lt.s32.totalorder %s22, 0
      %s404 = scalar_select %p403, %s22, 0
      %s405 = sadd.s32 %s404, %s402
      %s406 = sadd.s32 %s405, %s400
      %s407 = smul.addr %s406, 8
      %s408 = scalar_lea.vmem %s3, %s407
      // Predicated region
      $region41: #{conv_lowrank_forward.1} parent=31 // pred_check
        %p409 = pneg %p148
      $region42: #{conv_lowrank_forward.1} parent=31 // pred_check_branch
        %411 = sbr.rel (%p409) target = $region44
      $region43: #{conv_lowrank_forward.1} parent=31 // pred_region
        _
      $region44: #{conv_lowrank_forward.1} parent=31 // pred_fallthru
        _
    $region32: #{conv_lowrank_forward.1} parent=5 // pred_fallthru
      _
    %p412 = scmp.le.s32.totalorder 2, %s9
    // Predicated region
    $region45: #{conv_lowrank_forward.1} parent=5 // pred_check
      %p413 = pneg %p412
    $region46: #{conv_lowrank_forward.1} parent=5 // pred_check_branch
      %415 = sbr.rel (%p413) target = $region48
    $region47: #{conv_lowrank_forward.1} parent=5 // pred_region
      %s416 = ssub.s32 %s9, 2
      // Predicated region
      $region49: #{conv_lowrank_forward.1} parent=47 // pred_check
        %p417 = pneg %p154
      $region50: #{conv_lowrank_forward.1} parent=47 // pred_check_branch
        %419 = sbr.rel (%p417) target = $region52
      $region51: #{conv_lowrank_forward.1} parent=47 // pred_region
        %p420 = scmp.lt.s32.totalorder %s24, 1
        %s421 = scalar_select %p420, %s24, 1
        %p422 = scmp.lt.s32.totalorder %s25, 0
        %s423 = scalar_select %p422, %s25, 0
        %p424 = scmp.lt.s32.totalorder %s26, 0
        %s425 = scalar_select %p424, %s26, 0
        %s426 = sadd.s32 %s425, %s423
        %s427 = sadd.s32 %s426, %s421
        %s428 = smul.addr %s427, 8
        %s429 = scalar_lea.vmem %s3, %s428
      $region52: #{conv_lowrank_forward.1} parent=47 // pred_fallthru
        _
    $region48: #{conv_lowrank_forward.1} parent=5 // pred_fallthru
      _
  $region6: #{conv_lowrank_forward.1} parent=0 // loop_footer
    %s13 = sadd.s32 1, %s9
  $region7: #{conv_lowrank_forward.1} parent=0 // loop_footer_branch
    %8 = sbr.rel target = $region3
  $region8: #{conv_lowrank_forward.1} parent=0 // loop_exit
    _

</llo_original>
